<compile_context>
chip_gen: v7x
topology: tpu7x:2x2x1
jax: 0.10.0
libtpu: 0.0.40
codegen_flags: <defaults>
</compile_context>

<pallas_src>
import jax
import jax.numpy as jnp
from jax.experimental import pallas as pl
from jax.experimental.pallas import tpu as pltpu


def _make_dqn_kernel(compute_dtype):
    """Fused 4-layer MLP in the (features, batch) orientation.

    Matmul operands are cast to `compute_dtype` (f32 or bf16) in-kernel;
    MXU accumulation, bias add and ReLU stay in f32."""

    def kernel(x_ref,
               w1_ref, b1_ref,
               w2_ref, b2_ref,
               w3_ref, b3_ref,
               w4_ref, b4_ref,
               o_ref):
        def layer(h, w_ref, b_ref, relu):
            acc = jnp.dot(w_ref[...].astype(compute_dtype),
                          h.astype(compute_dtype),
                          preferred_element_type=jnp.float32)
            acc = acc + b_ref[...]            # (out, 1) lane-broadcast, f32
            return jnp.maximum(acc, 0.0) if relu else acc

        h = x_ref[...]                        # (num_states, TB), f32
        h = layer(h, w1_ref, b1_ref, True)
        h = layer(h, w2_ref, b2_ref, True)
        h = layer(h, w3_ref, b3_ref, True)
        o_ref[...] = layer(h, w4_ref, b4_ref, False).astype(o_ref.dtype)

    return kernel


def _default_min_steps():
    # v7x has 2 TensorCores per chip: keep >= 2 "parallel" grid steps for
    # large batches so they shard across cores. v5e/v6e (1 TC): 1 step.
    try:
        kind = jax.devices()[0].device_kind.lower()
        return 2 if "v7" in kind else 1
    except Exception:
        return 1


def _choose_tile(B, num_states, num_actions, block_b, min_steps):
    """Pick the lane (batch) tile width. Returns (tb, num_grid_steps)."""
    if block_b is not None:
        tb = int(block_b)
    else:
        # Aim for >= ~1 MiB of streamed x+out bytes per grid step: the fixed
        # per-step cost is ~0.35 us, so thin tiles are pure loop overhead.
        bytes_per_col = 4 * (num_states + num_actions)
        tb = max(128, ((1 << 20) // bytes_per_col) // 128 * 128)
        if min_steps > 1 and B > 256:
            # Cap the tile so the grid keeps >= min_steps steps (v7x megacore).
            tb = min(tb, 128 * pl.cdiv(pl.cdiv(B, min_steps), 128))
    if B <= tb:
        # Single full-extent step: no lane-divisibility constraint, no padding.
        return B, 1
    tb = max(128, (tb // 128) * 128)          # lane-aligned multi-step tile
    return tb, pl.cdiv(B, tb)                 # last block may be partial (masked)


def dqn_forward_t(x_t, params, *, block_b=None, min_steps=None, use_bf16=False):
    """Preferred entry point: x_t has shape (num_states, B) [batch on lanes].
    Returns Q-values of shape (num_actions, B), float32."""
    x_t = jnp.asarray(x_t, jnp.float32)       # mirrors `x.float()` in torch
    num_states, B = x_t.shape
    hidden = params["w1"].shape[0]
    num_actions = params["w4"].shape[0]

    if min_steps is None:
        min_steps = _default_min_steps()
    tb, steps = _choose_tile(B, num_states, num_actions, block_b, min_steps)

    w1, b1 = params["w1"], params["b1"]
    w2, b2 = params["w2"], params["b2"]
    w3, b3 = params["w3"], params["b3"]
    w4, b4 = params["w4"], params["b4"]
    args = (x_t, w1, b1, w2, b2, w3, b3, w4, b4)

    def _resident(a):
        # Full-extent, VMEM-resident block (constant index_map => no re-DMA).
        return pl.BlockSpec(a.shape, lambda i: (0, 0))

    in_specs = [
        pl.BlockSpec((num_states, tb), lambda i: (0, i)),  # x: streamed, lane-dense
        _resident(w1), _resident(b1),
        _resident(w2), _resident(b2),
        _resident(w3), _resident(b3),
        _resident(w4), _resident(b4),
    ]
    out_spec = pl.BlockSpec((num_actions, tb), lambda i: (0, i))

    flops = 2 * B * (num_states * hidden + 2 * hidden * hidden
                     + hidden * num_actions)
    param_bytes = sum(int(a.size) * a.dtype.itemsize for a in args[1:])
    bytes_accessed = (int(x_t.size) * x_t.dtype.itemsize
                      + num_actions * B * 4 + param_bytes)
    cost = pl.CostEstimate(flops=flops, transcendentals=0,
                           bytes_accessed=bytes_accessed)

    compute_dtype = jnp.bfloat16 if use_bf16 else jnp.float32
    return pl.pallas_call(
        _make_dqn_kernel(compute_dtype),
        out_shape=jax.ShapeDtypeStruct((num_actions, B), jnp.float32),
        grid=(steps,),
        in_specs=in_specs,
        out_specs=out_spec,
        compiler_params=pltpu.CompilerParams(
            dimension_semantics=("parallel",)),   # batch tiles are independent
        cost_estimate=cost,
    )(*args)


def dqn_forward(x, params, **kwargs):
    """Module-compatible entry: x is (B, num_states); returns (B, num_actions).
    Prefer dqn_forward_t when the producer can emit the (num_states, B) layout
    directly -- the transposes here are small extra XLA copies."""
    x = jnp.asarray(x, jnp.float32)
    return dqn_forward_t(x.T, params, **kwargs).T


def init_dqn_params(key, num_states, num_actions, hidden=32):
    """torch.nn.Linear default init: U(-1/sqrt(fan_in), 1/sqrt(fan_in)).
    Weights stored torch-native as (out_features, in_features); biases as
    (out_features, 1) so they lane-broadcast inside the kernel."""
    dims = [(hidden, num_states), (hidden, hidden),
            (hidden, hidden), (num_actions, hidden)]
    params = {}
    keys = jax.random.split(key, 2 * len(dims))
    for idx, (fan_out, fan_in) in enumerate(dims):
        bound = 1.0 / (fan_in ** 0.5)
        params[f"w{idx + 1}"] = jax.random.uniform(
            keys[2 * idx], (fan_out, fan_in), jnp.float32, -bound, bound)
        params[f"b{idx + 1}"] = jax.random.uniform(
            keys[2 * idx + 1], (fan_out, 1), jnp.float32, -bound, bound)
    return params


def _reference_forward(x, params):
    """Pure-JAX reference in the torch orientation: x (B, num_states)."""
    h = jnp.asarray(x, jnp.float32)
    for i in range(1, 5):
        h = h @ params[f"w{i}"].T + params[f"b{i}"][:, 0]
        if i < 4:
            h = jnp.maximum(h, 0.0)
    return h


if __name__ == "__main__":
    key = jax.random.PRNGKey(0)
    k_param, k_small, k_big = jax.random.split(key, 3)

    num_states = 8     # small "state" vector
    num_actions = 4    # small action space
    params = init_dqn_params(k_param, num_states, num_actions)

    # 1) Tiny acting-path batch through the module-native (B, num_states) API
    #    (single full-extent grid step; no padding at all).
    x_small = jax.random.normal(k_small, (2, num_states), jnp.float32)
    y_small = dqn_forward(x_small, params)
    jax.block_until_ready(y_small)
    assert y_small.shape == (2, num_actions)
    assert jnp.allclose(y_small, _reference_forward(x_small, params),
                        atol=1e-5, rtol=1e-5)

    # 2) Replay-style batch through the preferred transposed entry point:
    #    two lane-dense grid steps of (8, 512) / (4, 512) blocks.
    x_big = jax.random.normal(k_big, (1024, num_states), jnp.float32)
    ref_big = _reference_forward(x_big, params)
    y_big_t = dqn_forward_t(x_big.T, params, block_b=512)
    jax.block_until_ready(y_big_t)
    assert y_big_t.shape == (num_actions, 1024)
    assert jnp.allclose(y_big_t.T, ref_big, atol=1e-4, rtol=1e-4)

    # 3) Batch that is not a multiple of the lane width, default tiling
    #    (no jnp.pad; either full-extent single step or a masked partial block).
    x_odd = x_big[:1000]
    y_odd = dqn_forward(x_odd, params)
    jax.block_until_ready(y_odd)
    assert y_odd.shape == (1000, num_actions)
    assert jnp.allclose(y_odd, ref_big[:1000], atol=1e-4, rtol=1e-4)

    # 4) bf16 MXU path: refs stay f32 in HBM, cast to bf16 only inside the
    #    kernel (f32 accumulation), so total HBM traffic is unchanged.
    y_bf16_t = dqn_forward_t(x_big.T, params, block_b=512, use_bf16=True)
    jax.block_until_ready(y_bf16_t)
    assert y_bf16_t.shape == (num_actions, 1024)
    assert bool(jnp.all(jnp.isfinite(y_bf16_t)))
    # NOTE: bf16 rounding can flip argmax for near-tied Q-values vs f32.
    assert jnp.allclose(y_bf16_t.T, ref_big, atol=1e-1, rtol=1e-1)

    print("KERNEL_OK")
</pallas_src>

<mosaic_0001>
module attributes {stable_mosaic.version = 11 : i64} {
  func.func @kernel(%arg0: i32, %arg1: memref<8x2xf32, #tpu.memory_space<vmem>>, %arg2: memref<32x8xf32, #tpu.memory_space<vmem>>, %arg3: memref<32x1xf32, #tpu.memory_space<vmem>>, %arg4: memref<32x32xf32, #tpu.memory_space<vmem>>, %arg5: memref<32x1xf32, #tpu.memory_space<vmem>>, %arg6: memref<32x32xf32, #tpu.memory_space<vmem>>, %arg7: memref<32x1xf32, #tpu.memory_space<vmem>>, %arg8: memref<4x32xf32, #tpu.memory_space<vmem>>, %arg9: memref<4x1xf32, #tpu.memory_space<vmem>>, %arg10: memref<4x2xf32, #tpu.memory_space<vmem>>) attributes {dimension_semantics = [#tpu.dimension_semantics<parallel>], iteration_bounds = array<i64: 1>, scalar_prefetch = 0 : i64, scratch_operands = 0 : i64, tpu.core_type = #tpu.core_type<tc>, window_params = [{transform_indices = @transform_0, window_bounds = array<i64: 8, 2>}, {pipeline_mode = #tpu.pipeline_mode<synchronous>, transform_indices = @transform_1, window_bounds = array<i64: 32, 8>}, {pipeline_mode = #tpu.pipeline_mode<synchronous>, transform_indices = @transform_2, window_bounds = array<i64: 32, 1>}, {pipeline_mode = #tpu.pipeline_mode<synchronous>, transform_indices = @transform_3, window_bounds = array<i64: 32, 32>}, {pipeline_mode = #tpu.pipeline_mode<synchronous>, transform_indices = @transform_4, window_bounds = array<i64: 32, 1>}, {pipeline_mode = #tpu.pipeline_mode<synchronous>, transform_indices = @transform_5, window_bounds = array<i64: 32, 32>}, {pipeline_mode = #tpu.pipeline_mode<synchronous>, transform_indices = @transform_6, window_bounds = array<i64: 32, 1>}, {pipeline_mode = #tpu.pipeline_mode<synchronous>, transform_indices = @transform_7, window_bounds = array<i64: 4, 32>}, {pipeline_mode = #tpu.pipeline_mode<synchronous>, transform_indices = @transform_8, window_bounds = array<i64: 4, 1>}, {transform_indices = @transform_9, window_bounds = array<i64: 4, 2>}]} {
    %c0 = arith.constant 0 : index
    %c0_0 = arith.constant 0 : index
    %0 = vector.load %arg1[%c0, %c0_0] : memref<8x2xf32, #tpu.memory_space<vmem>>, vector<8x2xf32>
    %c0_1 = arith.constant 0 : index
    %c0_2 = arith.constant 0 : index
    %1 = vector.load %arg2[%c0_1, %c0_2] : memref<32x8xf32, #tpu.memory_space<vmem>>, vector<32x8xf32>
    %cst = arith.constant dense<0.000000e+00> : vector<32x2xf32>
    %2 = tpu.matmul %1, %0, %cst {dimension_numbers = #tpu.dot_dimension_numbers<[1], [0], [0], [1], [0, 0, 1, 1], [], []>} : vector<32x8xf32>, vector<8x2xf32>, vector<32x2xf32> -> vector<32x2xf32>
    %c0_3 = arith.constant 0 : index
    %c0_4 = arith.constant 0 : index
    %3 = vector.load %arg3[%c0_3, %c0_4] : memref<32x1xf32, #tpu.memory_space<vmem>>, vector<32x1xf32>
    %4 = vector.broadcast %3 : vector<32x1xf32> to vector<32x2xf32>
    %5 = arith.addf %2, %4 : vector<32x2xf32>
    %cst_5 = arith.constant 0.000000e+00 : f32
    %6 = vector.broadcast %cst_5 : f32 to vector<32x2xf32>
    %7 = arith.maximumf %5, %6 : vector<32x2xf32>
    %c0_6 = arith.constant 0 : index
    %c0_7 = arith.constant 0 : index
    %8 = vector.load %arg4[%c0_6, %c0_7] : memref<32x32xf32, #tpu.memory_space<vmem>>, vector<32x32xf32>
    %cst_8 = arith.constant dense<0.000000e+00> : vector<32x2xf32>
    %9 = tpu.matmul %8, %7, %cst_8 {dimension_numbers = #tpu.dot_dimension_numbers<[1], [0], [0], [1], [0, 0, 1, 1], [], []>} : vector<32x32xf32>, vector<32x2xf32>, vector<32x2xf32> -> vector<32x2xf32>
    %c0_9 = arith.constant 0 : index
    %c0_10 = arith.constant 0 : index
    %10 = vector.load %arg5[%c0_9, %c0_10] : memref<32x1xf32, #tpu.memory_space<vmem>>, vector<32x1xf32>
    %11 = vector.broadcast %10 : vector<32x1xf32> to vector<32x2xf32>
    %12 = arith.addf %9, %11 : vector<32x2xf32>
    %cst_11 = arith.constant 0.000000e+00 : f32
    %13 = vector.broadcast %cst_11 : f32 to vector<32x2xf32>
    %14 = arith.maximumf %12, %13 : vector<32x2xf32>
    %c0_12 = arith.constant 0 : index
    %c0_13 = arith.constant 0 : index
    %15 = vector.load %arg6[%c0_12, %c0_13] : memref<32x32xf32, #tpu.memory_space<vmem>>, vector<32x32xf32>
    %cst_14 = arith.constant dense<0.000000e+00> : vector<32x2xf32>
    %16 = tpu.matmul %15, %14, %cst_14 {dimension_numbers = #tpu.dot_dimension_numbers<[1], [0], [0], [1], [0, 0, 1, 1], [], []>} : vector<32x32xf32>, vector<32x2xf32>, vector<32x2xf32> -> vector<32x2xf32>
    %c0_15 = arith.constant 0 : index
    %c0_16 = arith.constant 0 : index
    %17 = vector.load %arg7[%c0_15, %c0_16] : memref<32x1xf32, #tpu.memory_space<vmem>>, vector<32x1xf32>
    %18 = vector.broadcast %17 : vector<32x1xf32> to vector<32x2xf32>
    %19 = arith.addf %16, %18 : vector<32x2xf32>
    %cst_17 = arith.constant 0.000000e+00 : f32
    %20 = vector.broadcast %cst_17 : f32 to vector<32x2xf32>
    %21 = arith.maximumf %19, %20 : vector<32x2xf32>
    %c0_18 = arith.constant 0 : index
    %c0_19 = arith.constant 0 : index
    %22 = vector.load %arg8[%c0_18, %c0_19] : memref<4x32xf32, #tpu.memory_space<vmem>>, vector<4x32xf32>
    %cst_20 = arith.constant dense<0.000000e+00> : vector<4x2xf32>
    %23 = tpu.matmul %22, %21, %cst_20 {dimension_numbers = #tpu.dot_dimension_numbers<[1], [0], [0], [1], [0, 0, 1, 1], [], []>} : vector<4x32xf32>, vector<32x2xf32>, vector<4x2xf32> -> vector<4x2xf32>
    %c0_21 = arith.constant 0 : index
    %c0_22 = arith.constant 0 : index
    %24 = vector.load %arg9[%c0_21, %c0_22] : memref<4x1xf32, #tpu.memory_space<vmem>>, vector<4x1xf32>
    %25 = vector.broadcast %24 : vector<4x1xf32> to vector<4x2xf32>
    %26 = arith.addf %23, %25 : vector<4x2xf32>
    %c0_23 = arith.constant 0 : index
    %c0_24 = arith.constant 0 : index
    %27 = vector.load %arg10[%c0_23, %c0_24] : memref<4x2xf32, #tpu.memory_space<vmem>>, vector<4x2xf32>
    tpu.vector_store %arg10[%c0_23, %c0_24], %26 {strides = array<i32>} : memref<4x2xf32, #tpu.memory_space<vmem>>, vector<4x2xf32>,
    return
  }
  func.func @transform_0(%arg0: i32) -> (i32, i32) {
    %c0_i32 = arith.constant 0 : i32
    %c0_i32_0 = arith.constant 0 : i32
    return %c0_i32, %arg0 : i32, i32
  }
  func.func @transform_1(%arg0: i32) -> (i32, i32) {
    %c0_i32 = arith.constant 0 : i32
    %c0_i32_0 = arith.constant 0 : i32
    %c0_i32_1 = arith.constant 0 : i32
    return %c0_i32, %c0_i32_0 : i32, i32
  }
  func.func @transform_2(%arg0: i32) -> (i32, i32) {
    %c0_i32 = arith.constant 0 : i32
    %c0_i32_0 = arith.constant 0 : i32
    %c0_i32_1 = arith.constant 0 : i32
    return %c0_i32, %c0_i32_0 : i32, i32
  }
  func.func @transform_3(%arg0: i32) -> (i32, i32) {
    %c0_i32 = arith.constant 0 : i32
    %c0_i32_0 = arith.constant 0 : i32
    %c0_i32_1 = arith.constant 0 : i32
    return %c0_i32, %c0_i32_0 : i32, i32
  }
  func.func @transform_4(%arg0: i32) -> (i32, i32) {
    %c0_i32 = arith.constant 0 : i32
    %c0_i32_0 = arith.constant 0 : i32
    %c0_i32_1 = arith.constant 0 : i32
    return %c0_i32, %c0_i32_0 : i32, i32
  }
  func.func @transform_5(%arg0: i32) -> (i32, i32) {
    %c0_i32 = arith.constant 0 : i32
    %c0_i32_0 = arith.constant 0 : i32
    %c0_i32_1 = arith.constant 0 : i32
    return %c0_i32, %c0_i32_0 : i32, i32
  }
  func.func @transform_6(%arg0: i32) -> (i32, i32) {
    %c0_i32 = arith.constant 0 : i32
    %c0_i32_0 = arith.constant 0 : i32
    %c0_i32_1 = arith.constant 0 : i32
    return %c0_i32, %c0_i32_0 : i32, i32
  }
  func.func @transform_7(%arg0: i32) -> (i32, i32) {
    %c0_i32 = arith.constant 0 : i32
    %c0_i32_0 = arith.constant 0 : i32
    %c0_i32_1 = arith.constant 0 : i32
    return %c0_i32, %c0_i32_0 : i32, i32
  }
  func.func @transform_8(%arg0: i32) -> (i32, i32) {
    %c0_i32 = arith.constant 0 : i32
    %c0_i32_0 = arith.constant 0 : i32
    %c0_i32_1 = arith.constant 0 : i32
    return %c0_i32, %c0_i32_0 : i32, i32
  }
  func.func @transform_9(%arg0: i32) -> (i32, i32) {
    %c0_i32 = arith.constant 0 : i32
    %c0_i32_0 = arith.constant 0 : i32
    return %c0_i32, %arg0 : i32, i32
  }
}

</mosaic_0001>

<llo_original>
// kernel: tpu_custom_call.1
$region0: #{tpu_custom_call.1}
  #allocation0 [shape = 'u32[]', space=smem, size = 0x4, offset = 0x4, fixed_abs, tag = 'smem constant byte address 0x4 - core index']
  #allocation1 [shape = 'u32[144,128]{1,0:T(1,128)}', space=vmem, size = 0x12000, scoped, tag = 'internal scratch']
  %s0 = inlined_call_operand.vmem [shape: f32[8,2], index: 0, kind: input, shape index: {}]
  %s1 = inlined_call_operand.vmem [shape: f32[32,8], index: 1, kind: input, shape index: {}]
  %s2 = inlined_call_operand.vmem [shape: f32[32,1], index: 2, kind: input, shape index: {}]
  %s3 = inlined_call_operand.vmem [shape: f32[32,32], index: 3, kind: input, shape index: {}]
  %s4 = inlined_call_operand.vmem [shape: f32[32,1], index: 4, kind: input, shape index: {}]
  %s5 = inlined_call_operand.vmem [shape: f32[32,32], index: 5, kind: input, shape index: {}]
  %s6 = inlined_call_operand.vmem [shape: f32[32,1], index: 6, kind: input, shape index: {}]
  %s7 = inlined_call_operand.vmem [shape: f32[4,32], index: 7, kind: input, shape index: {}]
  %s8 = inlined_call_operand.vmem [shape: f32[4,1], index: 8, kind: input, shape index: {}]
  %s9 = inlined_call_operand.vmem [shape: f32[4,2], index: 9, kind: output, shape index: {}]
  %s10 = sld [smem:[#allocation0]]
  $region46: #{tpu_custom_call.1} parent=0
    _
  %s12 = ssub.s32 1, %s10
  %s13 = scalar_select 0, %s12, %s10
  // Predicated region
  $region2: #{tpu_custom_call.1} parent=0 // pred_check
    _
  $region3: #{tpu_custom_call.1} parent=0 // pred_check_branch
    %15 = sbr.rel (0) target = $region5
  $region4: #{tpu_custom_call.1} parent=0 // pred_region
    _
  $region5: #{tpu_custom_call.1} parent=0 // pred_fallthru
    _
  // Predicated region
  $region6: #{tpu_custom_call.1} parent=0 // pred_check
    _
  $region7: #{tpu_custom_call.1} parent=0 // pred_check_branch
    %17 = sbr.rel (0) target = $region9
  $region8: #{tpu_custom_call.1} parent=0 // pred_region
    _
  $region9: #{tpu_custom_call.1} parent=0 // pred_fallthru
    _
  // Predicated region
  $region10: #{tpu_custom_call.1} parent=0 // pred_check
    _
  $region11: #{tpu_custom_call.1} parent=0 // pred_check_branch
    %19 = sbr.rel (0) target = $region13
  $region12: #{tpu_custom_call.1} parent=0 // pred_region
    _
  $region13: #{tpu_custom_call.1} parent=0 // pred_fallthru
    _
  // Predicated region
  $region14: #{tpu_custom_call.1} parent=0 // pred_check
    _
  $region15: #{tpu_custom_call.1} parent=0 // pred_check_branch
    %21 = sbr.rel (0) target = $region17
  $region16: #{tpu_custom_call.1} parent=0 // pred_region
    _
  $region17: #{tpu_custom_call.1} parent=0 // pred_fallthru
    _
  // Predicated region
  $region18: #{tpu_custom_call.1} parent=0 // pred_check
    _
  $region19: #{tpu_custom_call.1} parent=0 // pred_check_branch
    %23 = sbr.rel (0) target = $region21
  $region20: #{tpu_custom_call.1} parent=0 // pred_region
    _
  $region21: #{tpu_custom_call.1} parent=0 // pred_fallthru
    _
  // Predicated region
  $region22: #{tpu_custom_call.1} parent=0 // pred_check
    _
  $region23: #{tpu_custom_call.1} parent=0 // pred_check_branch
    %25 = sbr.rel (0) target = $region25
  $region24: #{tpu_custom_call.1} parent=0 // pred_region
    _
  $region25: #{tpu_custom_call.1} parent=0 // pred_fallthru
    _
  // Predicated region
  $region26: #{tpu_custom_call.1} parent=0 // pred_check
    _
  $region27: #{tpu_custom_call.1} parent=0 // pred_check_branch
    %27 = sbr.rel (0) target = $region29
  $region28: #{tpu_custom_call.1} parent=0 // pred_region
    _
  $region29: #{tpu_custom_call.1} parent=0 // pred_fallthru
    _
  // Predicated region
  $region30: #{tpu_custom_call.1} parent=0 // pred_check
    _
  $region31: #{tpu_custom_call.1} parent=0 // pred_check_branch
    %29 = sbr.rel (0) target = $region33
  $region32: #{tpu_custom_call.1} parent=0 // pred_region
    _
  $region33: #{tpu_custom_call.1} parent=0 // pred_fallthru
    _
  // Predicated region
  $region34: #{tpu_custom_call.1} parent=0 // pred_check
    _
  $region35: #{tpu_custom_call.1} parent=0 // pred_check_branch
    %31 = sbr.rel (0) target = $region37
  $region36: #{tpu_custom_call.1} parent=0 // pred_region
    _
  $region37: #{tpu_custom_call.1} parent=0 // pred_fallthru
    _
  %v32 = vld [vmem:[%s0] sm:$0xff]
  %v33 = vld [vmem:[%s1] sm:$0xff]
  %v34 = vld [vmem:[%s1 + $0x8] sm:$0xff]
  %v35 = vld [vmem:[%s1 + $0x10] sm:$0xff]
  %v36 = vld [vmem:[%s1 + $0x18] sm:$0xff]
  %v37 = vld [vmem:[%s2] sm:$0xff]
  %v38 = vld [vmem:[%s2 + $0x8] sm:$0xff]
  %v39 = vld [vmem:[%s2 + $0x10] sm:$0xff]
  %v40 = vld [vmem:[%s2 + $0x18] sm:$0xff]
  %42 = vset.pattern.permute.xlu0 0
  %43 = vperm.xlu0 %42, %v37
  %v44 = vpop.permute.xlu0 %43
  %47 = vset.pattern.permute.xlu0 0
  %48 = vperm.xlu0 %47, %v38
  %v49 = vpop.permute.xlu0 %48
  %52 = vset.pattern.permute.xlu0 0
  %53 = vperm.xlu0 %52, %v39
  %v54 = vpop.permute.xlu0 %53
  %57 = vset.pattern.permute.xlu0 0
  %58 = vperm.xlu0 %57, %v40
  %v59 = vpop.permute.xlu0 %58
  %vm61 = vcmask 64512
  %v63 = vsel %vm61, %v33, 0
  %v66 = vsel %vm61, %v34, 0
  %v69 = vsel %vm61, %v35, 0
  %v72 = vsel %vm61, %v36, 0
  %74 = vmatprep.subr.mxu0 0.0
  %75 = vmatpush1.msra.mxu0 %v32
  %76 = vmatprep.subr.mxu0 0.0
  %77 = vmatpush1.msra.mxu0 0.0
  %78 = vmatprep.subr.mxu0 0.0
  %79 = vmatpush1.msra.mxu0 0.0
  %80 = vmatprep.subr.mxu0 0.0
  %81 = vmatpush1.msra.mxu0 0.0
  %82 = vmatprep.subr.mxu0 0.0
  %83 = vmatpush1.msra.mxu0 0.0
  %84 = vmatprep.subr.mxu0 0.0
  %85 = vmatpush1.msra.mxu0 0.0
  %86 = vmatprep.subr.mxu0 0.0
  %87 = vmatpush1.msra.mxu0 0.0
  %88 = vmatprep.subr.mxu0 0.0
  %89 = vmatpush1.msra.mxu0 0.0
  %90 = vmatprep.subr.mxu0 0.0
  %91 = vmatpush1.msra.mxu0 0.0
  %92 = vmatprep.subr.mxu0 0.0
  %93 = vmatpush1.msra.mxu0 0.0
  %94 = vmatprep.subr.mxu0 0.0
  %95 = vmatpush1.msra.mxu0 0.0
  %96 = vmatprep.subr.mxu0 0.0
  %97 = vmatpush1.msra.mxu0 0.0
  %98 = vmatprep.subr.mxu0 0.0
  %99 = vmatpush1.msra.mxu0 0.0
  %100 = vmatprep.subr.mxu0 0.0
  %101 = vmatpush1.msra.mxu0 0.0
  %102 = vmatprep.subr.mxu0 0.0
  %103 = vmatpush1.msra.mxu0 0.0
  %104 = vmatprep.subr.mxu0 0.0
  %105 = vmatpush1.msra.mxu0 0.0
  %106 = vmatprep.subr.mxu0 0.0
  %107 = vmatpush1.msra.mxu0 0.0
  %108 = vmatprep.subr.mxu0 0.0
  %109 = vmatpush1.msra.mxu0 0.0
  %110 = vmatprep.subr.mxu0 0.0
  %111 = vmatpush1.msra.mxu0 0.0
  %112 = vmatprep.subr.mxu0 0.0
  %113 = vmatpush1.msra.mxu0 0.0
  %114 = vmatprep.subr.mxu0 0.0
  %115 = vmatpush1.msra.mxu0 0.0
  %116 = vmatprep.subr.mxu0 0.0
  %117 = vmatpush1.msra.mxu0 0.0
  %118 = vmatprep.subr.mxu0 0.0
  %119 = vmatpush1.msra.mxu0 0.0
  %120 = vmatprep.subr.mxu0 0.0
  %121 = vmatpush1.msra.mxu0 0.0
  %122 = vmatprep.subr.mxu0 0.0
  %123 = vmatpush1.msra.mxu0 0.0
  %124 = vmatprep.subr.mxu0 0.0
  %125 = vmatpush1.msra.mxu0 0.0
  %126 = vmatprep.subr.mxu0 0.0
  %127 = vmatpush1.msra.mxu0 0.0
  %128 = vmatprep.subr.mxu0 0.0
  %129 = vmatpush1.msra.mxu0 0.0
  %130 = vmatprep.subr.mxu0 0.0
  %131 = vmatpush1.msra.mxu0 0.0
  %132 = vmatprep.subr.mxu0 0.0
  %133 = vmatpush1.msra.mxu0 0.0
  %134 = vmatprep.subr.mxu0 0.0
  %135 = vmatpush1.msra.mxu0 0.0
  %136 = vmatprep.subr.mxu0 0.0
  %137 = vmatpush1.msra.mxu0 0.0
  %138 = vmatprep.mubr.f32.mxu0 0.0
  %139 = vmatmul.mubr.f32.gmra.mrb[0].mxu0 %v63
  %v140 = vpop.f32.mrb[0].mxu0
  %v141 = vadd.f32 %v44, %v140
  %v142 = vpop.f32.mrb[0].mxu0
  %143 = vmatprep.mubr.f32.mxu0 0.0
  %144 = vmatmul.mubr.f32.gmra.mrb[0].mxu0 %v66
  %v145 = vpop.f32.mrb[0].mxu0
  %v146 = vadd.f32 %v49, %v145
  %v147 = vpop.f32.mrb[0].mxu0
  %148 = vmatprep.mubr.f32.mxu0 0.0
  %149 = vmatmul.mubr.f32.gmra.mrb[0].mxu0 %v69
  %v150 = vpop.f32.mrb[0].mxu0
  %v151 = vadd.f32 %v54, %v150
  %v152 = vpop.f32.mrb[0].mxu0
  %153 = vmatprep.mubr.f32.mxu0 0.0
  %154 = vmatmul.mubr.f32.gmra.mrb[0].mxu0 %v72
  %v155 = vpop.f32.mrb[0].mxu0
  %v156 = vadd.f32 %v59, %v155
  %v157 = vpop.f32.mrb[0].mxu0
  %158 = vdwg.mxu0
  %v159 = vmax.f32 %v141, 0.0
  %v160 = vmax.f32 %v146, 0.0
  %v161 = vmax.f32 %v151, 0.0
  %v162 = vmax.f32 %v156, 0.0
  %v163 = vld [vmem:[%s3] sm:$0xff]
  %v164 = vld [vmem:[%s3 + $0x8] sm:$0xff]
  %v165 = vld [vmem:[%s3 + $0x10] sm:$0xff]
  %v166 = vld [vmem:[%s3 + $0x18] sm:$0xff]
  %v167 = vld [vmem:[%s4] sm:$0xff]
  %v168 = vld [vmem:[%s4 + $0x8] sm:$0xff]
  %v169 = vld [vmem:[%s4 + $0x10] sm:$0xff]
  %v170 = vld [vmem:[%s4 + $0x18] sm:$0xff]
  %172 = vset.pattern.permute.xlu0 0
  %173 = vperm.xlu0 %172, %v167
  %v174 = vpop.permute.xlu0 %173
  %177 = vset.pattern.permute.xlu0 0
  %178 = vperm.xlu0 %177, %v168
  %v179 = vpop.permute.xlu0 %178
  %182 = vset.pattern.permute.xlu0 0
  %183 = vperm.xlu0 %182, %v169
  %v184 = vpop.permute.xlu0 %183
  %187 = vset.pattern.permute.xlu0 0
  %188 = vperm.xlu0 %187, %v170
  %v189 = vpop.permute.xlu0 %188
  %vm191 = vcmask 261120
  %v193 = vsel %vm191, %v163, 0
  %v196 = vsel %vm191, %v164, 0
  %v199 = vsel %vm191, %v165, 0
  %v202 = vsel %vm191, %v166, 0
  %204 = vmatprep.subr.mxu0 0.0
  %205 = vmatpush1.msra.mxu0 %v159
  %206 = vmatprep.subr.mxu0 0.0
  %207 = vmatpush1.msra.mxu0 %v160
  %208 = vmatprep.subr.mxu0 0.0
  %209 = vmatpush1.msra.mxu0 %v161
  %210 = vmatprep.subr.mxu0 0.0
  %211 = vmatpush1.msra.mxu0 %v162
  %212 = vmatprep.subr.mxu0 0.0
  %213 = vmatpush1.msra.mxu0 0.0
  %214 = vmatprep.subr.mxu0 0.0
  %215 = vmatpush1.msra.mxu0 0.0
  %216 = vmatprep.subr.mxu0 0.0
  %217 = vmatpush1.msra.mxu0 0.0
  %218 = vmatprep.subr.mxu0 0.0
  %219 = vmatpush1.msra.mxu0 0.0
  %220 = vmatprep.subr.mxu0 0.0
  %221 = vmatpush1.msra.mxu0 0.0
  %222 = vmatprep.subr.mxu0 0.0
  %223 = vmatpush1.msra.mxu0 0.0
  %224 = vmatprep.subr.mxu0 0.0
  %225 = vmatpush1.msra.mxu0 0.0
  %226 = vmatprep.subr.mxu0 0.0
  %227 = vmatpush1.msra.mxu0 0.0
  %228 = vmatprep.subr.mxu0 0.0
  %229 = vmatpush1.msra.mxu0 0.0
  %230 = vmatprep.subr.mxu0 0.0
  %231 = vmatpush1.msra.mxu0 0.0
  %232 = vmatprep.subr.mxu0 0.0
  %233 = vmatpush1.msra.mxu0 0.0
  %234 = vmatprep.subr.mxu0 0.0
  %235 = vmatpush1.msra.mxu0 0.0
  %236 = vmatprep.subr.mxu0 0.0
  %237 = vmatpush1.msra.mxu0 0.0
  %238 = vmatprep.subr.mxu0 0.0
  %239 = vmatpush1.msra.mxu0 0.0
  %240 = vmatprep.subr.mxu0 0.0
  %241 = vmatpush1.msra.mxu0 0.0
  %242 = vmatprep.subr.mxu0 0.0
  %243 = vmatpush1.msra.mxu0 0.0
  %244 = vmatprep.subr.mxu0 0.0
  %245 = vmatpush1.msra.mxu0 0.0
  %246 = vmatprep.subr.mxu0 0.0
  %247 = vmatpush1.msra.mxu0 0.0
  %248 = vmatprep.subr.mxu0 0.0
  %249 = vmatpush1.msra.mxu0 0.0
  %250 = vmatprep.subr.mxu0 0.0
  %251 = vmatpush1.msra.mxu0 0.0
  %252 = vmatprep.subr.mxu0 0.0
  %253 = vmatpush1.msra.mxu0 0.0
  %254 = vmatprep.subr.mxu0 0.0
  %255 = vmatpush1.msra.mxu0 0.0
  %256 = vmatprep.subr.mxu0 0.0
  %257 = vmatpush1.msra.mxu0 0.0
  %258 = vmatprep.subr.mxu0 0.0
  %259 = vmatpush1.msra.mxu0 0.0
  %260 = vmatprep.subr.mxu0 0.0
  %261 = vmatpush1.msra.mxu0 0.0
  %262 = vmatprep.subr.mxu0 0.0
  %263 = vmatpush1.msra.mxu0 0.0
  %264 = vmatprep.subr.mxu0 0.0
  %265 = vmatpush1.msra.mxu0 0.0
  %266 = vmatprep.subr.mxu0 0.0
  %267 = vmatpush1.msra.mxu0 0.0
  %268 = vmatprep.mubr.f32.mxu0 0.0
  %269 = vmatmul.mubr.f32.gmra.mrb[0].mxu0 %v193
  %v270 = vpop.f32.mrb[0].mxu0
  %v271 = vadd.f32 %v174, %v270
  %v272 = vpop.f32.mrb[0].mxu0
  %273 = vmatprep.mubr.f32.mxu0 0.0
  %274 = vmatmul.mubr.f32.gmra.mrb[0].mxu0 %v196
  %v275 = vpop.f32.mrb[0].mxu0
  %v276 = vadd.f32 %v179, %v275
  %v277 = vpop.f32.mrb[0].mxu0
  %278 = vmatprep.mubr.f32.mxu0 0.0
  %279 = vmatmul.mubr.f32.gmra.mrb[0].mxu0 %v199
  %v280 = vpop.f32.mrb[0].mxu0
  %v281 = vadd.f32 %v184, %v280
  %v282 = vpop.f32.mrb[0].mxu0
  %283 = vmatprep.mubr.f32.mxu0 0.0
  %284 = vmatmul.mubr.f32.gmra.mrb[0].mxu0 %v202
  %v285 = vpop.f32.mrb[0].mxu0
  %v286 = vadd.f32 %v189, %v285
  %v287 = vpop.f32.mrb[0].mxu0
  %288 = vdwg.mxu0
  %v289 = vmax.f32 %v271, 0.0
  %v290 = vmax.f32 %v276, 0.0
  %v291 = vmax.f32 %v281, 0.0
  %v292 = vmax.f32 %v286, 0.0
  %v293 = vld [vmem:[%s5] sm:$0xff]
  %v294 = vld [vmem:[%s5 + $0x8] sm:$0xff]
  %v295 = vld [vmem:[%s5 + $0x10] sm:$0xff]
  %v296 = vld [vmem:[%s5 + $0x18] sm:$0xff]
  %v297 = vld [vmem:[%s6] sm:$0xff]
  %v298 = vld [vmem:[%s6 + $0x8] sm:$0xff]
  %v299 = vld [vmem:[%s6 + $0x10] sm:$0xff]
  %v300 = vld [vmem:[%s6 + $0x18] sm:$0xff]
  %302 = vset.pattern.permute.xlu0 0
  %303 = vperm.xlu0 %302, %v297
  %v304 = vpop.permute.xlu0 %303
  %307 = vset.pattern.permute.xlu0 0
  %308 = vperm.xlu0 %307, %v298
  %v309 = vpop.permute.xlu0 %308
  %312 = vset.pattern.permute.xlu0 0
  %313 = vperm.xlu0 %312, %v299
  %v314 = vpop.permute.xlu0 %313
  %317 = vset.pattern.permute.xlu0 0
  %318 = vperm.xlu0 %317, %v300
  %v319 = vpop.permute.xlu0 %318
  %v322 = vsel %vm191, %v293, 0
  %v325 = vsel %vm191, %v294, 0
  %v328 = vsel %vm191, %v295, 0
  %v331 = vsel %vm191, %v296, 0
  %333 = vmatprep.subr.mxu0 0.0
  %334 = vmatpush1.msra.mxu0 %v289
  %335 = vmatprep.subr.mxu0 0.0
  %336 = vmatpush1.msra.mxu0 %v290
  %337 = vmatprep.subr.mxu0 0.0
  %338 = vmatpush1.msra.mxu0 %v291
  %339 = vmatprep.subr.mxu0 0.0
  %340 = vmatpush1.msra.mxu0 %v292
  %341 = vmatprep.subr.mxu0 0.0
  %342 = vmatpush1.msra.mxu0 0.0
  %343 = vmatprep.subr.mxu0 0.0
  %344 = vmatpush1.msra.mxu0 0.0
  %345 = vmatprep.subr.mxu0 0.0
  %346 = vmatpush1.msra.mxu0 0.0
  %347 = vmatprep.subr.mxu0 0.0
  %348 = vmatpush1.msra.mxu0 0.0
  %349 = vmatprep.subr.mxu0 0.0
  %350 = vmatpush1.msra.mxu0 0.0
  %351 = vmatprep.subr.mxu0 0.0
  %352 = vmatpush1.msra.mxu0 0.0
  %353 = vmatprep.subr.mxu0 0.0
  %354 = vmatpush1.msra.mxu0 0.0
  %355 = vmatprep.subr.mxu0 0.0
  %356 = vmatpush1.msra.mxu0 0.0
  %357 = vmatprep.subr.mxu0 0.0
  %358 = vmatpush1.msra.mxu0 0.0
  %359 = vmatprep.subr.mxu0 0.0
  %360 = vmatpush1.msra.mxu0 0.0
  %361 = vmatprep.subr.mxu0 0.0
  %362 = vmatpush1.msra.mxu0 0.0
  %363 = vmatprep.subr.mxu0 0.0
  %364 = vmatpush1.msra.mxu0 0.0
  %365 = vmatprep.subr.mxu0 0.0
  %366 = vmatpush1.msra.mxu0 0.0
  %367 = vmatprep.subr.mxu0 0.0
  %368 = vmatpush1.msra.mxu0 0.0
  %369 = vmatprep.subr.mxu0 0.0
  %370 = vmatpush1.msra.mxu0 0.0
  %371 = vmatprep.subr.mxu0 0.0
  %372 = vmatpush1.msra.mxu0 0.0
  %373 = vmatprep.subr.mxu0 0.0
  %374 = vmatpush1.msra.mxu0 0.0
  %375 = vmatprep.subr.mxu0 0.0
  %376 = vmatpush1.msra.mxu0 0.0
  %377 = vmatprep.subr.mxu0 0.0
  %378 = vmatpush1.msra.mxu0 0.0
  %379 = vmatprep.subr.mxu0 0.0
  %380 = vmatpush1.msra.mxu0 0.0
  %381 = vmatprep.subr.mxu0 0.0
  %382 = vmatpush1.msra.mxu0 0.0
  %383 = vmatprep.subr.mxu0 0.0
  %384 = vmatpush1.msra.mxu0 0.0
  %385 = vmatprep.subr.mxu0 0.0
  %386 = vmatpush1.msra.mxu0 0.0
  %387 = vmatprep.subr.mxu0 0.0
  %388 = vmatpush1.msra.mxu0 0.0
  %389 = vmatprep.subr.mxu0 0.0
  %390 = vmatpush1.msra.mxu0 0.0
  %391 = vmatprep.subr.mxu0 0.0
  %392 = vmatpush1.msra.mxu0 0.0
  %393 = vmatprep.subr.mxu0 0.0
  %394 = vmatpush1.msra.mxu0 0.0
  %395 = vmatprep.subr.mxu0 0.0
  %396 = vmatpush1.msra.mxu0 0.0
  %397 = vmatprep.mubr.f32.mxu0 0.0
  %398 = vmatmul.mubr.f32.gmra.mrb[0].mxu0 %v322
  %v399 = vpop.f32.mrb[0].mxu0
  %v400 = vadd.f32 %v304, %v399
  %v401 = vpop.f32.mrb[0].mxu0
  %402 = vmatprep.mubr.f32.mxu0 0.0
  %403 = vmatmul.mubr.f32.gmra.mrb[0].mxu0 %v325
  %v404 = vpop.f32.mrb[0].mxu0
  %v405 = vadd.f32 %v309, %v404
  %v406 = vpop.f32.mrb[0].mxu0
  %407 = vmatprep.mubr.f32.mxu0 0.0
  %408 = vmatmul.mubr.f32.gmra.mrb[0].mxu0 %v328
  %v409 = vpop.f32.mrb[0].mxu0
  %v410 = vadd.f32 %v314, %v409
  %v411 = vpop.f32.mrb[0].mxu0
  %412 = vmatprep.mubr.f32.mxu0 0.0
  %413 = vmatmul.mubr.f32.gmra.mrb[0].mxu0 %v331
  %v414 = vpop.f32.mrb[0].mxu0
  %v415 = vadd.f32 %v319, %v414
  %v416 = vpop.f32.mrb[0].mxu0
  %417 = vdwg.mxu0
  %v418 = vmax.f32 %v400, 0.0
  %v419 = vmax.f32 %v405, 0.0
  %v420 = vmax.f32 %v410, 0.0
  %v421 = vmax.f32 %v415, 0.0
  %v422 = vld [vmem:[%s7] sm:$0xf]
  %v423 = vld [vmem:[%s8] sm:$0xf]
  %425 = vset.pattern.permute.xlu0 0
  %426 = vperm.xlu0 %425, %v423
  %v427 = vpop.permute.xlu0 %426
  %v430 = vsel %vm191, %v422, 0
  %432 = vmatprep.subr.mxu0 0.0
  %433 = vmatpush1.msra.mxu0 %v418
  %434 = vmatprep.subr.mxu0 0.0
  %435 = vmatpush1.msra.mxu0 %v419
  %436 = vmatprep.subr.mxu0 0.0
  %437 = vmatpush1.msra.mxu0 %v420
  %438 = vmatprep.subr.mxu0 0.0
  %439 = vmatpush1.msra.mxu0 %v421
  %440 = vmatprep.subr.mxu0 0.0
  %441 = vmatpush1.msra.mxu0 0.0
  %442 = vmatprep.subr.mxu0 0.0
  %443 = vmatpush1.msra.mxu0 0.0
  %444 = vmatprep.subr.mxu0 0.0
  %445 = vmatpush1.msra.mxu0 0.0
  %446 = vmatprep.subr.mxu0 0.0
  %447 = vmatpush1.msra.mxu0 0.0
  %448 = vmatprep.subr.mxu0 0.0
  %449 = vmatpush1.msra.mxu0 0.0
  %450 = vmatprep.subr.mxu0 0.0
  %451 = vmatpush1.msra.mxu0 0.0
  %452 = vmatprep.subr.mxu0 0.0
  %453 = vmatpush1.msra.mxu0 0.0
  %454 = vmatprep.subr.mxu0 0.0
  %455 = vmatpush1.msra.mxu0 0.0
  %456 = vmatprep.subr.mxu0 0.0
  %457 = vmatpush1.msra.mxu0 0.0
  %458 = vmatprep.subr.mxu0 0.0
  %459 = vmatpush1.msra.mxu0 0.0
  %460 = vmatprep.subr.mxu0 0.0
  %461 = vmatpush1.msra.mxu0 0.0
  %462 = vmatprep.subr.mxu0 0.0
  %463 = vmatpush1.msra.mxu0 0.0
  %464 = vmatprep.subr.mxu0 0.0
  %465 = vmatpush1.msra.mxu0 0.0
  %466 = vmatprep.subr.mxu0 0.0
  %467 = vmatpush1.msra.mxu0 0.0
  %468 = vmatprep.subr.mxu0 0.0
  %469 = vmatpush1.msra.mxu0 0.0
  %470 = vmatprep.subr.mxu0 0.0
  %471 = vmatpush1.msra.mxu0 0.0
  %472 = vmatprep.subr.mxu0 0.0
  %473 = vmatpush1.msra.mxu0 0.0
  %474 = vmatprep.subr.mxu0 0.0
  %475 = vmatpush1.msra.mxu0 0.0
  %476 = vmatprep.subr.mxu0 0.0
  %477 = vmatpush1.msra.mxu0 0.0
  %478 = vmatprep.subr.mxu0 0.0
  %479 = vmatpush1.msra.mxu0 0.0
  %480 = vmatprep.subr.mxu0 0.0
  %481 = vmatpush1.msra.mxu0 0.0
  %482 = vmatprep.subr.mxu0 0.0
  %483 = vmatpush1.msra.mxu0 0.0
  %484 = vmatprep.subr.mxu0 0.0
  %485 = vmatpush1.msra.mxu0 0.0
  %486 = vmatprep.subr.mxu0 0.0
  %487 = vmatpush1.msra.mxu0 0.0
  %488 = vmatprep.subr.mxu0 0.0
  %489 = vmatpush1.msra.mxu0 0.0
  %490 = vmatprep.subr.mxu0 0.0
  %491 = vmatpush1.msra.mxu0 0.0
  %492 = vmatprep.subr.mxu0 0.0
  %493 = vmatpush1.msra.mxu0 0.0
  %494 = vmatprep.subr.mxu0 0.0
  %495 = vmatpush1.msra.mxu0 0.0
  %496 = vmatprep.mubr.f32.mxu0 0.0
  %497 = vmatmul.mubr.f32.gmra.mrb[0].mxu0 %v430
  %v498 = vpop.f32.mrb[0].mxu0
  %v499 = vadd.f32 %v427, %v498
  %v500 = vpop.f32.mrb[0].mxu0
  %501 = vdwg.mxu0
  %vm502 = vcmask 11264
  %503 = vst.msk [vmem:[%s9] sm:$0xf] %vm502, %v499
  // Predicated region
  $region38: #{tpu_custom_call.1} parent=0 // pred_check
    _
  $region39: #{tpu_custom_call.1} parent=0 // pred_check_branch
    %505 = sbr.rel (0) target = $region41
  $region40: #{tpu_custom_call.1} parent=0 // pred_region
    _
  $region41: #{tpu_custom_call.1} parent=0 // pred_fallthru
    _
  // Predicated region
  $region42: #{tpu_custom_call.1} parent=0 // pred_check
    _
  $region43: #{tpu_custom_call.1} parent=0 // pred_check_branch
    %507 = sbr.rel (0) target = $region45
  $region44: #{tpu_custom_call.1} parent=0 // pred_region
    _
  $region45: #{tpu_custom_call.1} parent=0 // pred_fallthru
    _

</llo_original>
